<compile_context>
chip_gen: v7x
topology: tpu7x:2x2x1
jax: 0.10.0
libtpu: 0.0.40
codegen_flags: <defaults>
</compile_context>

<pallas_src>
import functools
import math

import jax
import jax.numpy as jnp
import numpy as np
from jax.experimental import pallas as pl
from jax.experimental.pallas import tpu as pltpu


# ----------------------------------------------------------------------------
# Pallas kernel: one (batch, head) pair per grid step
# ----------------------------------------------------------------------------
def _msr_kernel(decay_ref,                                   # SMEM (H,) prefetch
                x_ref, wq_ref, wqr_ref, wk_ref, wkr_ref,
                wv_ref, wg_ref, wo_ref, sin_ref, cos_ref,
                o_ref, *, T, eps):
    f32 = jnp.float32
    bf16 = jnp.bfloat16
    h = pl.program_id(1)

    x = x_ref[0].astype(bf16)                                # (T, E)

    # --- per-head projections: bf16 MXU inputs, f32 accumulation ---------
    q = jnp.dot(x, wq_ref[0], preferred_element_type=f32)    # (T, KD)
    q_rot = jnp.dot(x, wqr_ref[0], preferred_element_type=f32)   # rotate_every_two(q)
    k = jnp.dot(x, wk_ref[0], preferred_element_type=f32)    # (T, KD) (scaling folded in)
    k_rot = jnp.dot(x, wkr_ref[0], preferred_element_type=f32)
    v = jnp.dot(x, wv_ref[0], preferred_element_type=f32)    # (T, HD)
    g = jnp.dot(x, wg_ref[0], preferred_element_type=f32)    # (T, HD)

    # --- theta shift (rotary), no cross-lane ops --------------------------
    sin = sin_ref[...]                                       # (T, KD)
    cos = cos_ref[...]
    qr = (q * cos + q_rot * sin).astype(bf16)
    kr = (k * cos + k_rot * sin).astype(bf16)

    # --- decay mask generated in-kernel from the per-head SMEM scalar -----
    dec = decay_ref[h]                                       # scalar f32 (negative)
    ti = jax.lax.broadcasted_iota(jnp.int32, (T, T), 0)
    tj = jax.lax.broadcasted_iota(jnp.int32, (T, T), 1)
    diff = (ti - tj).astype(f32)                             # i - j
    dm = jnp.exp(dec * jnp.maximum(diff, 0.0))
    dm = jnp.where(diff >= 0.0, dm, 0.0)                     # causal decay
    dm = dm * jax.lax.rsqrt(jnp.sum(dm, axis=-1, keepdims=True))  # row-normalize

    # --- retention core for head h ----------------------------------------
    qk = jax.lax.dot_general(qr, kr, (((1,), (1,)), ((), ())),
                             preferred_element_type=f32)     # (T, T)
    qk = qk * dm
    denom = jnp.clip(jnp.sum(jnp.abs(qk), axis=-1, keepdims=True),
                     1.0, 50000.0)
    qk = qk * pl.reciprocal(denom, approx=True)
    out = jnp.dot(qk.astype(bf16), v.astype(bf16),
                  preferred_element_type=f32)                # (T, HD)

    # --- RMSNorm over head_dim (no affine) --------------------------------
    out = out * jax.lax.rsqrt(jnp.mean(out * out, axis=-1, keepdims=True) + eps)

    # --- swish gate + this head's slice of the output projection ----------
    gated = (g * jax.nn.sigmoid(g)) * out                    # (T, HD)
    y = jnp.dot(gated.astype(bf16), wo_ref[0],
                preferred_element_type=f32)                  # (T, E)

    # --- accumulate heads in the f32 output block (resident across h) -----
    @pl.when(h == 0)
    def _():
        o_ref[...] = jnp.zeros_like(o_ref)

    o_ref[0] += y


# ----------------------------------------------------------------------------
# Wrapper
# ----------------------------------------------------------------------------
def multiscale_retention(x, wq, wk, wv, wg, wo, sin, cos, decay,
                         *, num_heads, eps=1e-6):
    B, T, E = x.shape
    V = wv.shape[1]
    H = num_heads
    KD = E // H
    HD = V // H
    scaling = KD ** -0.5
    bf16 = jnp.bfloat16

    # rotate_every_two applied to the OUTPUT columns of a (in, out) weight:
    #   x @ rot_cols(w) == rotate_every_two(x @ w)
    def rot_cols(w):
        we = w[:, 0::2]
        wo_ = w[:, 1::2]
        return jnp.stack([-wo_, we], axis=-1).reshape(w.shape)

    wq_f = jnp.asarray(wq, jnp.float32)
    wk_f = jnp.asarray(wk, jnp.float32) * scaling            # fold key scaling

    wq_h = wq_f.reshape(E, H, KD).transpose(1, 0, 2).astype(bf16)
    wqr_h = rot_cols(wq_f).reshape(E, H, KD).transpose(1, 0, 2).astype(bf16)
    wk_h = wk_f.reshape(E, H, KD).transpose(1, 0, 2).astype(bf16)
    wkr_h = rot_cols(wk_f).reshape(E, H, KD).transpose(1, 0, 2).astype(bf16)
    wv_h = jnp.asarray(wv).reshape(E, H, HD).transpose(1, 0, 2).astype(bf16)
    wg_h = jnp.asarray(wg).reshape(E, H, HD).transpose(1, 0, 2).astype(bf16)
    wo_h = jnp.asarray(wo).reshape(H, HD, E).astype(bf16)

    sin_f = jnp.asarray(sin, jnp.float32)                    # (T, KD)
    cos_f = jnp.asarray(cos, jnp.float32)
    decay_f = jnp.asarray(decay, jnp.float32).reshape(H)     # per-head decay scalars

    kernel = functools.partial(_msr_kernel, T=T, eps=eps)

    return pl.pallas_call(
        kernel,
        out_shape=jax.ShapeDtypeStruct((B, T, E), jnp.float32),
        grid_spec=pltpu.PrefetchScalarGridSpec(
            num_scalar_prefetch=1,                           # decay -> SMEM
            grid=(B, H),
            in_specs=[
                pl.BlockSpec((1, T, E), lambda b, h, d: (b, 0, 0)),    # x
                pl.BlockSpec((1, E, KD), lambda b, h, d: (h, 0, 0)),   # wq  (head h)
                pl.BlockSpec((1, E, KD), lambda b, h, d: (h, 0, 0)),   # wq_rot
                pl.BlockSpec((1, E, KD), lambda b, h, d: (h, 0, 0)),   # wk  (pre-scaled)
                pl.BlockSpec((1, E, KD), lambda b, h, d: (h, 0, 0)),   # wk_rot
                pl.BlockSpec((1, E, HD), lambda b, h, d: (h, 0, 0)),   # wv
                pl.BlockSpec((1, E, HD), lambda b, h, d: (h, 0, 0)),   # wg
                pl.BlockSpec((1, HD, E), lambda b, h, d: (h, 0, 0)),   # wo  (head rows)
                pl.BlockSpec((T, KD), lambda b, h, d: (0, 0)),         # sin
                pl.BlockSpec((T, KD), lambda b, h, d: (0, 0)),         # cos
            ],
            out_specs=pl.BlockSpec((1, T, E), lambda b, h, d: (b, 0, 0)),
        ),
        compiler_params=pltpu.CompilerParams(
            dimension_semantics=("parallel", "arbitrary")),
    )(decay_f, x, wq_h, wqr_h, wk_h, wkr_h, wv_h, wg_h, wo_h, sin_f, cos_f)


# ----------------------------------------------------------------------------
# Pure-JAX reference (mirrors the PyTorch forward, parallel path, f32)
# ----------------------------------------------------------------------------
def reference(x, wq, wk, wv, wg, wo, sin, cos, mask, *, num_heads, eps=1e-6):
    B, T, E = x.shape
    V = wv.shape[1]
    H = num_heads
    KD = E // H
    HD = V // H
    scaling = KD ** -0.5

    q = x @ wq
    k = (x @ wk) * scaling
    v = x @ wv
    g = x @ wg

    q = q.reshape(B, T, H, KD).transpose(0, 2, 1, 3)
    k = k.reshape(B, T, H, KD).transpose(0, 2, 1, 3)

    def rot(z):
        z1 = z[..., ::2]
        z2 = z[..., 1::2]
        return jnp.stack((-z2, z1), axis=-1).reshape(z.shape)

    qr = q * cos + rot(q) * sin
    kr = k * cos + rot(k) * sin

    vr = v.reshape(B, T, H, HD).transpose(0, 2, 1, 3)
    qk = jnp.einsum('bhtk,bhsk->bhts', qr, kr)
    qk = qk * mask
    qk = qk / jnp.clip(jnp.sum(jnp.abs(qk), -1, keepdims=True), 1.0, 50000.0)
    out = jnp.einsum('bhts,bhsd->bhtd', qk, vr)
    out = out.transpose(0, 2, 1, 3)                # (B, T, H, HD)
    out = out * jax.lax.rsqrt(jnp.mean(out * out, -1, keepdims=True) + eps)
    out = out.reshape(B, T, H * HD)
    out = jax.nn.silu(g) * out
    return out @ wo


# ----------------------------------------------------------------------------
# Main
# ----------------------------------------------------------------------------
if __name__ == "__main__":
    B, T = 2, 8
    E = 32            # embed_dim
    V = 64            # value_dim
    H = 4             # num_heads
    KD = E // H       # key_dim  = 8
    HD = V // H       # head_dim = 16
    eps = 1e-6

    key = jax.random.PRNGKey(0)
    kx, kq, kk, kv, kg, ko = jax.random.split(key, 6)

    # deterministic xavier-uniform-like init (weights stored as (in, out))
    def xavier(k, fan_in, fan_out, gain):
        bound = gain * math.sqrt(6.0 / (fan_in + fan_out))
        return jax.random.uniform(k, (fan_in, fan_out), jnp.float32,
                                  minval=-bound, maxval=bound)

    g_qkvg = 2.0 ** (-2.5)
    g_out = 2.0 ** (-1.0)
    wq = xavier(kq, E, E, g_qkvg)
    wk = xavier(kk, E, E, g_qkvg)
    wv = xavier(kv, E, V, g_qkvg)
    wg = xavier(kg, E, V, g_qkvg)
    wo = xavier(ko, V, E, g_out)

    x = jax.random.normal(kx, (B, T, E), jnp.float32)

    # --- rel_pos: (sin, cos) rotary tables + per-head decay ---------------
    angle = 1.0 / (10000.0 ** np.linspace(0.0, 1.0, KD // 2))
    angle = np.repeat(angle, 2)                      # (KD,) pairwise-duplicated
    pos = np.arange(T, dtype=np.float32)[:, None]    # (T, 1)
    sin = jnp.asarray(np.sin(pos * angle[None, :]), jnp.float32)   # (T, KD)
    cos = jnp.asarray(np.cos(pos * angle[None, :]), jnp.float32)   # (T, KD)

    decay = np.log(1.0 - 2.0 ** (-5.0 - np.arange(H, dtype=np.float32)))  # (H,)

    # reference decay mask (the kernel regenerates this in-VMEM from `decay`)
    idx = np.arange(T)
    diff = idx[:, None] - idx[None, :]               # (T, T)
    mask_np = np.where(diff >= 0,
                       np.exp(decay[:, None, None] * diff[None, :, :]),
                       0.0).astype(np.float32)       # (H, T, T)
    mask_np = mask_np / np.sqrt(mask_np.sum(-1, keepdims=True))
    mask_np = np.nan_to_num(mask_np)
    mask = jnp.asarray(mask_np)

    # --- run kernel and check against pure-JAX reference ------------------
    y = multiscale_retention(x, wq, wk, wv, wg, wo, sin, cos,
                             jnp.asarray(decay, jnp.float32),
                             num_heads=H, eps=eps)
    y = jax.block_until_ready(y)

    y_ref = reference(x, wq, wk, wv, wg, wo, sin, cos, mask,
                      num_heads=H, eps=eps)
    # bf16 MXU inputs + approx reciprocal -> relaxed tolerances vs f32 ref.
    np.testing.assert_allclose(np.asarray(y), np.asarray(y_ref),
                               rtol=2e-2, atol=2e-2)

    print("KERNEL_OK")
</pallas_src>

<mosaic_0001>
module attributes {stable_mosaic.version = 11 : i64} {
  func.func @_msr_kernel(%arg0: i32, %arg1: i32, %arg2: memref<4xf32, #tpu.memory_space<smem>>, %arg3: memref<1x8x32xf32, #tpu.memory_space<vmem>>, %arg4: memref<1x32x8xbf16, #tpu.memory_space<vmem>>, %arg5: memref<1x32x8xbf16, #tpu.memory_space<vmem>>, %arg6: memref<1x32x8xbf16, #tpu.memory_space<vmem>>, %arg7: memref<1x32x8xbf16, #tpu.memory_space<vmem>>, %arg8: memref<1x32x16xbf16, #tpu.memory_space<vmem>>, %arg9: memref<1x32x16xbf16, #tpu.memory_space<vmem>>, %arg10: memref<1x16x32xbf16, #tpu.memory_space<vmem>>, %arg11: memref<8x8xf32, #tpu.memory_space<vmem>>, %arg12: memref<8x8xf32, #tpu.memory_space<vmem>>, %arg13: memref<1x8x32xf32, #tpu.memory_space<vmem>>) attributes {dimension_semantics = [#tpu.dimension_semantics<parallel>, #tpu.dimension_semantics<arbitrary>], iteration_bounds = array<i64: 2, 4>, scalar_prefetch = 1 : i64, scratch_operands = 0 : i64, tpu.core_type = #tpu.core_type<tc>, window_params = [{transform_indices = @transform_0, window_bounds = array<i64: 1, 8, 32>}, {transform_indices = @transform_1, window_bounds = array<i64: 1, 32, 8>}, {transform_indices = @transform_2, window_bounds = array<i64: 1, 32, 8>}, {transform_indices = @transform_3, window_bounds = array<i64: 1, 32, 8>}, {transform_indices = @transform_4, window_bounds = array<i64: 1, 32, 8>}, {transform_indices = @transform_5, window_bounds = array<i64: 1, 32, 16>}, {transform_indices = @transform_6, window_bounds = array<i64: 1, 32, 16>}, {transform_indices = @transform_7, window_bounds = array<i64: 1, 16, 32>}, {pipeline_mode = #tpu.pipeline_mode<synchronous>, transform_indices = @transform_8, window_bounds = array<i64: 8, 8>}, {pipeline_mode = #tpu.pipeline_mode<synchronous>, transform_indices = @transform_9, window_bounds = array<i64: 8, 8>}, {transform_indices = @transform_10, window_bounds = array<i64: 1, 8, 32>}]} {
    %c0 = arith.constant 0 : index
    %c0_0 = arith.constant 0 : index
    %c0_1 = arith.constant 0 : index
    %0 = vector.load %arg3[%c0, %c0_0, %c0_1] : memref<1x8x32xf32, #tpu.memory_space<vmem>>, vector<1x8x32xf32>
    %1 = vector.shape_cast %0 : vector<1x8x32xf32> to vector<8x32xf32>
    %2 = arith.truncf %1 : vector<8x32xf32> to vector<8x32xbf16>
    %c0_2 = arith.constant 0 : index
    %c0_3 = arith.constant 0 : index
    %c0_4 = arith.constant 0 : index
    %3 = vector.load %arg4[%c0_2, %c0_3, %c0_4] : memref<1x32x8xbf16, #tpu.memory_space<vmem>>, vector<1x32x8xbf16>
    %4 = vector.shape_cast %3 : vector<1x32x8xbf16> to vector<32x8xbf16>
    %cst = arith.constant dense<0.000000e+00> : vector<8x8xf32>
    %5 = tpu.matmul %2, %4, %cst {dimension_numbers = #tpu.dot_dimension_numbers<[1], [0], [0], [1], [0, 0, 1, 1], [], []>} : vector<8x32xbf16>, vector<32x8xbf16>, vector<8x8xf32> -> vector<8x8xf32>
    %c0_5 = arith.constant 0 : index
    %c0_6 = arith.constant 0 : index
    %c0_7 = arith.constant 0 : index
    %6 = vector.load %arg5[%c0_5, %c0_6, %c0_7] : memref<1x32x8xbf16, #tpu.memory_space<vmem>>, vector<1x32x8xbf16>
    %7 = vector.shape_cast %6 : vector<1x32x8xbf16> to vector<32x8xbf16>
    %cst_8 = arith.constant dense<0.000000e+00> : vector<8x8xf32>
    %8 = tpu.matmul %2, %7, %cst_8 {dimension_numbers = #tpu.dot_dimension_numbers<[1], [0], [0], [1], [0, 0, 1, 1], [], []>} : vector<8x32xbf16>, vector<32x8xbf16>, vector<8x8xf32> -> vector<8x8xf32>
    %c0_9 = arith.constant 0 : index
    %c0_10 = arith.constant 0 : index
    %c0_11 = arith.constant 0 : index
    %9 = vector.load %arg6[%c0_9, %c0_10, %c0_11] : memref<1x32x8xbf16, #tpu.memory_space<vmem>>, vector<1x32x8xbf16>
    %10 = vector.shape_cast %9 : vector<1x32x8xbf16> to vector<32x8xbf16>
    %cst_12 = arith.constant dense<0.000000e+00> : vector<8x8xf32>
    %11 = tpu.matmul %2, %10, %cst_12 {dimension_numbers = #tpu.dot_dimension_numbers<[1], [0], [0], [1], [0, 0, 1, 1], [], []>} : vector<8x32xbf16>, vector<32x8xbf16>, vector<8x8xf32> -> vector<8x8xf32>
    %c0_13 = arith.constant 0 : index
    %c0_14 = arith.constant 0 : index
    %c0_15 = arith.constant 0 : index
    %12 = vector.load %arg7[%c0_13, %c0_14, %c0_15] : memref<1x32x8xbf16, #tpu.memory_space<vmem>>, vector<1x32x8xbf16>
    %13 = vector.shape_cast %12 : vector<1x32x8xbf16> to vector<32x8xbf16>
    %cst_16 = arith.constant dense<0.000000e+00> : vector<8x8xf32>
    %14 = tpu.matmul %2, %13, %cst_16 {dimension_numbers = #tpu.dot_dimension_numbers<[1], [0], [0], [1], [0, 0, 1, 1], [], []>} : vector<8x32xbf16>, vector<32x8xbf16>, vector<8x8xf32> -> vector<8x8xf32>
    %c0_17 = arith.constant 0 : index
    %c0_18 = arith.constant 0 : index
    %c0_19 = arith.constant 0 : index
    %15 = vector.load %arg8[%c0_17, %c0_18, %c0_19] : memref<1x32x16xbf16, #tpu.memory_space<vmem>>, vector<1x32x16xbf16>
    %16 = vector.shape_cast %15 : vector<1x32x16xbf16> to vector<32x16xbf16>
    %cst_20 = arith.constant dense<0.000000e+00> : vector<8x16xf32>
    %17 = tpu.matmul %2, %16, %cst_20 {dimension_numbers = #tpu.dot_dimension_numbers<[1], [0], [0], [1], [0, 0, 1, 1], [], []>} : vector<8x32xbf16>, vector<32x16xbf16>, vector<8x16xf32> -> vector<8x16xf32>
    %c0_21 = arith.constant 0 : index
    %c0_22 = arith.constant 0 : index
    %c0_23 = arith.constant 0 : index
    %18 = vector.load %arg9[%c0_21, %c0_22, %c0_23] : memref<1x32x16xbf16, #tpu.memory_space<vmem>>, vector<1x32x16xbf16>
    %19 = vector.shape_cast %18 : vector<1x32x16xbf16> to vector<32x16xbf16>
    %cst_24 = arith.constant dense<0.000000e+00> : vector<8x16xf32>
    %20 = tpu.matmul %2, %19, %cst_24 {dimension_numbers = #tpu.dot_dimension_numbers<[1], [0], [0], [1], [0, 0, 1, 1], [], []>} : vector<8x32xbf16>, vector<32x16xbf16>, vector<8x16xf32> -> vector<8x16xf32>
    %c0_25 = arith.constant 0 : index
    %c0_26 = arith.constant 0 : index
    %21 = vector.load %arg11[%c0_25, %c0_26] : memref<8x8xf32, #tpu.memory_space<vmem>>, vector<8x8xf32>
    %c0_27 = arith.constant 0 : index
    %c0_28 = arith.constant 0 : index
    %22 = vector.load %arg12[%c0_27, %c0_28] : memref<8x8xf32, #tpu.memory_space<vmem>>, vector<8x8xf32>
    %23 = arith.mulf %5, %22 : vector<8x8xf32>
    %24 = arith.mulf %8, %21 : vector<8x8xf32>
    %25 = arith.addf %23, %24 : vector<8x8xf32>
    %26 = arith.truncf %25 : vector<8x8xf32> to vector<8x8xbf16>
    %27 = arith.mulf %11, %22 : vector<8x8xf32>
    %28 = arith.mulf %14, %21 : vector<8x8xf32>
    %29 = arith.addf %27, %28 : vector<8x8xf32>
    %30 = arith.truncf %29 : vector<8x8xf32> to vector<8x8xbf16>
    %31 = arith.index_cast %arg1 : i32 to index
    %32 = memref.load %arg2[%31] : memref<4xf32, #tpu.memory_space<smem>>
    %33 = tpu.iota {dimensions = array<i32: 0>} : vector<8x8xi32>
    %34 = tpu.iota {dimensions = array<i32: 1>} : vector<8x8xi32>
    %35 = arith.subi %33, %34 : vector<8x8xi32>
    %36 = arith.sitofp %35 : vector<8x8xi32> to vector<8x8xf32>
    %cst_29 = arith.constant 0.000000e+00 : f32
    %37 = vector.broadcast %cst_29 : f32 to vector<8x8xf32>
    %38 = arith.maximumf %36, %37 : vector<8x8xf32>
    %39 = vector.broadcast %32 : f32 to vector<8x8xf32>
    %40 = arith.mulf %39, %38 : vector<8x8xf32>
    %41 = math.exp %40 : vector<8x8xf32>
    %cst_30 = arith.constant 0.000000e+00 : f32
    %42 = vector.broadcast %cst_30 : f32 to vector<8x8xf32>
    %43 = arith.cmpf oge, %36, %42 : vector<8x8xf32>
    %cst_31 = arith.constant 0.000000e+00 : f32
    %44 = vector.broadcast %cst_31 : f32 to vector<8x8xf32>
    %45 = arith.select %43, %41, %44 : vector<8x8xi1>, vector<8x8xf32>
    %cst_32 = arith.constant dense<0.000000e+00> : vector<8xf32>
    %46 = vector.multi_reduction <add>, %45, %cst_32 [1] : vector<8x8xf32> to vector<8xf32>
    %47 = vector.shape_cast %46 : vector<8xf32> to vector<8x1xf32>
    %48 = math.rsqrt %47 : vector<8x1xf32>
    %49 = vector.broadcast %48 : vector<8x1xf32> to vector<8x8xf32>
    %50 = arith.mulf %45, %49 : vector<8x8xf32>
    %cst_33 = arith.constant dense<0.000000e+00> : vector<8x8xf32>
    %51 = tpu.matmul %26, %30, %cst_33 {dimension_numbers = #tpu.dot_dimension_numbers<[1], [1], [0], [0], [0, 0, 1, 0], [], []>} : vector<8x8xbf16>, vector<8x8xbf16>, vector<8x8xf32> -> vector<8x8xf32>
    %52 = arith.mulf %51, %50 : vector<8x8xf32>
    %53 = math.absf %52 : vector<8x8xf32>
    %cst_34 = arith.constant dense<0.000000e+00> : vector<8xf32>
    %54 = vector.multi_reduction <add>, %53, %cst_34 [1] : vector<8x8xf32> to vector<8xf32>
    %55 = vector.shape_cast %54 : vector<8xf32> to vector<8x1xf32>
    %cst_35 = arith.constant 1.000000e+00 : f32
    %cst_36 = arith.constant 5.000000e+04 : f32
    %56 = vector.broadcast %cst_35 : f32 to vector<8x1xf32>
    %57 = arith.maximumf %56, %55 : vector<8x1xf32>
    %58 = vector.broadcast %cst_36 : f32 to vector<8x1xf32>
    %59 = arith.minimumf %58, %57 : vector<8x1xf32>
    %60 = tpu.reciprocal %59 {approx = true} : vector<8x1xf32> -> vector<8x1xf32>
    %61 = vector.broadcast %60 : vector<8x1xf32> to vector<8x8xf32>
    %62 = arith.mulf %52, %61 : vector<8x8xf32>
    %63 = arith.truncf %62 : vector<8x8xf32> to vector<8x8xbf16>
    %64 = arith.truncf %17 : vector<8x16xf32> to vector<8x16xbf16>
    %cst_37 = arith.constant dense<0.000000e+00> : vector<8x16xf32>
    %65 = tpu.matmul %63, %64, %cst_37 {dimension_numbers = #tpu.dot_dimension_numbers<[1], [0], [0], [1], [0, 0, 1, 1], [], []>} : vector<8x8xbf16>, vector<8x16xbf16>, vector<8x16xf32> -> vector<8x16xf32>
    %66 = arith.mulf %65, %65 : vector<8x16xf32>
    %cst_38 = arith.constant dense<0.000000e+00> : vector<8xf32>
    %67 = vector.multi_reduction <add>, %66, %cst_38 [1] : vector<8x16xf32> to vector<8xf32>
    %68 = vector.shape_cast %67 : vector<8xf32> to vector<8x1xf32>
    %cst_39 = arith.constant 1.600000e+01 : f32
    %69 = vector.broadcast %cst_39 : f32 to vector<8x1xf32>
    %70 = arith.divf %68, %69 : vector<8x1xf32>
    %cst_40 = arith.constant 9.99999997E-7 : f32
    %71 = vector.broadcast %cst_40 : f32 to vector<8x1xf32>
    %72 = arith.addf %70, %71 : vector<8x1xf32>
    %73 = math.rsqrt %72 : vector<8x1xf32>
    %74 = vector.broadcast %73 : vector<8x1xf32> to vector<8x16xf32>
    %75 = arith.mulf %65, %74 : vector<8x16xf32>
    %76 = arith.negf %20 : vector<8x16xf32>
    %77 = math.exp %76 : vector<8x16xf32>
    %cst_41 = arith.constant 1.000000e+00 : f32
    %78 = vector.broadcast %cst_41 : f32 to vector<8x16xf32>
    %79 = arith.addf %78, %77 : vector<8x16xf32>
    %80 = arith.divf %78, %79 : vector<8x16xf32>
    %81 = arith.mulf %20, %80 : vector<8x16xf32>
    %82 = arith.mulf %81, %75 : vector<8x16xf32>
    %83 = arith.truncf %82 : vector<8x16xf32> to vector<8x16xbf16>
    %c0_42 = arith.constant 0 : index
    %c0_43 = arith.constant 0 : index
    %c0_44 = arith.constant 0 : index
    %84 = vector.load %arg10[%c0_42, %c0_43, %c0_44] : memref<1x16x32xbf16, #tpu.memory_space<vmem>>, vector<1x16x32xbf16>
    %85 = vector.shape_cast %84 : vector<1x16x32xbf16> to vector<16x32xbf16>
    %cst_45 = arith.constant dense<0.000000e+00> : vector<8x32xf32>
    %86 = tpu.matmul %83, %85, %cst_45 {dimension_numbers = #tpu.dot_dimension_numbers<[1], [0], [0], [1], [0, 0, 1, 1], [], []>} : vector<8x16xbf16>, vector<16x32xbf16>, vector<8x32xf32> -> vector<8x32xf32>
    %c0_i32 = arith.constant 0 : i32
    %87 = arith.cmpi eq, %arg1, %c0_i32 : i32
    %88 = arith.extui %87 : i1 to i32
    %c0_i32_46 = arith.constant 0 : i32
    %89 = arith.cmpi ne, %88, %c0_i32_46 : i32
    scf.if %89 {
      %cst_53 = arith.constant 0.000000e+00 : f32
      %96 = vector.broadcast %cst_53 : f32 to vector<1x8x32xf32>
      %c0_54 = arith.constant 0 : index
      %c0_55 = arith.constant 0 : index
      %c0_56 = arith.constant 0 : index
      %97 = vector.load %arg13[%c0_54, %c0_55, %c0_56] : memref<1x8x32xf32, #tpu.memory_space<vmem>>, vector<1x8x32xf32>
      tpu.vector_store %arg13[%c0_54, %c0_55, %c0_56], %96 {strides = array<i32>} : memref<1x8x32xf32, #tpu.memory_space<vmem>>, vector<1x8x32xf32>,
    } else {
    }
    %c0_47 = arith.constant 0 : index
    %c0_48 = arith.constant 0 : index
    %c0_49 = arith.constant 0 : index
    %90 = vector.load %arg13[%c0_47, %c0_48, %c0_49] : memref<1x8x32xf32, #tpu.memory_space<vmem>>, vector<1x8x32xf32>
    %91 = vector.shape_cast %90 : vector<1x8x32xf32> to vector<8x32xf32>
    %92 = arith.addf %91, %86 : vector<8x32xf32>
    %c0_50 = arith.constant 0 : index
    %c0_51 = arith.constant 0 : index
    %c0_52 = arith.constant 0 : index
    %93 = vector.load %arg13[%c0_50, %c0_51, %c0_52] : memref<1x8x32xf32, #tpu.memory_space<vmem>>, vector<1x8x32xf32>
    %94 = vector.shape_cast %93 : vector<1x8x32xf32> to vector<8x32xf32>
    %95 = vector.shape_cast %92 : vector<8x32xf32> to vector<1x8x32xf32>
    tpu.vector_store %arg13[%c0_50, %c0_51, %c0_52], %95 {strides = array<i32>} : memref<1x8x32xf32, #tpu.memory_space<vmem>>, vector<1x8x32xf32>,
    return
  }
  func.func @transform_0(%arg0: i32, %arg1: i32, %arg2: memref<4xf32, #tpu.memory_space<smem>>) -> (i32, i32, i32) {
    %c0_i32 = arith.constant 0 : i32
    %c0_i32_0 = arith.constant 0 : i32
    %c0_i32_1 = arith.constant 0 : i32
    return %arg0, %c0_i32, %c0_i32_0 : i32, i32, i32
  }
  func.func @transform_1(%arg0: i32, %arg1: i32, %arg2: memref<4xf32, #tpu.memory_space<smem>>) -> (i32, i32, i32) {
    %c0_i32 = arith.constant 0 : i32
    %c0_i32_0 = arith.constant 0 : i32
    %c0_i32_1 = arith.constant 0 : i32
    return %arg1, %c0_i32, %c0_i32_0 : i32, i32, i32
  }
  func.func @transform_2(%arg0: i32, %arg1: i32, %arg2: memref<4xf32, #tpu.memory_space<smem>>) -> (i32, i32, i32) {
    %c0_i32 = arith.constant 0 : i32
    %c0_i32_0 = arith.constant 0 : i32
    %c0_i32_1 = arith.constant 0 : i32
    return %arg1, %c0_i32, %c0_i32_0 : i32, i32, i32
  }
  func.func @transform_3(%arg0: i32, %arg1: i32, %arg2: memref<4xf32, #tpu.memory_space<smem>>) -> (i32, i32, i32) {
    %c0_i32 = arith.constant 0 : i32
    %c0_i32_0 = arith.constant 0 : i32
    %c0_i32_1 = arith.constant 0 : i32
    return %arg1, %c0_i32, %c0_i32_0 : i32, i32, i32
  }
  func.func @transform_4(%arg0: i32, %arg1: i32, %arg2: memref<4xf32, #tpu.memory_space<smem>>) -> (i32, i32, i32) {
    %c0_i32 = arith.constant 0 : i32
    %c0_i32_0 = arith.constant 0 : i32
    %c0_i32_1 = arith.constant 0 : i32
    return %arg1, %c0_i32, %c0_i32_0 : i32, i32, i32
  }
  func.func @transform_5(%arg0: i32, %arg1: i32, %arg2: memref<4xf32, #tpu.memory_space<smem>>) -> (i32, i32, i32) {
    %c0_i32 = arith.constant 0 : i32
    %c0_i32_0 = arith.constant 0 : i32
    %c0_i32_1 = arith.constant 0 : i32
    return %arg1, %c0_i32, %c0_i32_0 : i32, i32, i32
  }
  func.func @transform_6(%arg0: i32, %arg1: i32, %arg2: memref<4xf32, #tpu.memory_space<smem>>) -> (i32, i32, i32) {
    %c0_i32 = arith.constant 0 : i32
    %c0_i32_0 = arith.constant 0 : i32
    %c0_i32_1 = arith.constant 0 : i32
    return %arg1, %c0_i32, %c0_i32_0 : i32, i32, i32
  }
  func.func @transform_7(%arg0: i32, %arg1: i32, %arg2: memref<4xf32, #tpu.memory_space<smem>>) -> (i32, i32, i32) {
    %c0_i32 = arith.constant 0 : i32
    %c0_i32_0 = arith.constant 0 : i32
    %c0_i32_1 = arith.constant 0 : i32
    return %arg1, %c0_i32, %c0_i32_0 : i32, i32, i32
  }
  func.func @transform_8(%arg0: i32, %arg1: i32, %arg2: memref<4xf32, #tpu.memory_space<smem>>) -> (i32, i32) {
    %c0_i32 = arith.constant 0 : i32
    %c0_i32_0 = arith.constant 0 : i32
    %c0_i32_1 = arith.constant 0 : i32
    return %c0_i32, %c0_i32_0 : i32, i32
  }
  func.func @transform_9(%arg0: i32, %arg1: i32, %arg2: memref<4xf32, #tpu.memory_space<smem>>) -> (i32, i32) {
    %c0_i32 = arith.constant 0 : i32
    %c0_i32_0 = arith.constant 0 : i32
    %c0_i32_1 = arith.constant 0 : i32
    return %c0_i32, %c0_i32_0 : i32, i32
  }
  func.func @transform_10(%arg0: i32, %arg1: i32, %arg2: memref<4xf32, #tpu.memory_space<smem>>) -> (i32, i32, i32) {
    %c0_i32 = arith.constant 0 : i32
    %c0_i32_0 = arith.constant 0 : i32
    %c0_i32_1 = arith.constant 0 : i32
    return %arg0, %c0_i32, %c0_i32_0 : i32, i32, i32
  }
}

</mosaic_0001>

<llo_original>
// kernel: tpu_custom_call.1
$region0: #{tpu_custom_call.1}
  #allocation0 [shape = 'u32[]', space=smem, size = 0x4, offset = 0x4, fixed_abs, tag = 'smem constant byte address 0x4 - core index']
  #allocation1 [shape = 'u32[144,128]{1,0:T(1,128)}', space=vmem, size = 0x12000, scoped, tag = 'internal scratch']
  #allocation2 [shape = 's32[1]{0}', space=sflag, size = 0x4, scoped, tag = 'scoped memory for tpu_custom_call.1']
  #allocation3 [shape = 'u8[512]{0}', space=smem, size = 0x200, scoped, tag = 'prefetched SMEM operand 0']
  %s0 = inlined_call_operand.vmem [shape: f32[4], index: 0, kind: input, shape index: {}]
  %s1 = inlined_call_operand.vmem [shape: f32[2,8,32], index: 1, kind: input, shape index: {}]
  %s2 = inlined_call_operand.vmem [shape: bf16[4,32,8], index: 2, kind: input, shape index: {}]
  %s3 = inlined_call_operand.vmem [shape: bf16[4,32,8], index: 3, kind: input, shape index: {}]
  %s4 = inlined_call_operand.vmem [shape: bf16[4,32,8], index: 4, kind: input, shape index: {}]
  %s5 = inlined_call_operand.vmem [shape: bf16[4,32,8], index: 5, kind: input, shape index: {}]
  %s6 = inlined_call_operand.vmem [shape: bf16[4,32,16], index: 6, kind: input, shape index: {}]
  %s7 = inlined_call_operand.vmem [shape: bf16[4,32,16], index: 7, kind: input, shape index: {}]
  %s8 = inlined_call_operand.vmem [shape: bf16[4,16,32], index: 8, kind: input, shape index: {}]
  %s9 = inlined_call_operand.vmem [shape: f32[8,8], index: 9, kind: input, shape index: {}]
  %s10 = inlined_call_operand.vmem [shape: f32[8,8], index: 10, kind: input, shape index: {}]
  %s11 = inlined_call_operand.hbm [shape: f32[2,8,32], index: 11, kind: output, shape index: {}]
  %s12 = sld [smem:[#allocation0]]
  $region77: #{tpu_custom_call.1} parent=0
    _
  %s14 = ssub.s32 1, %s12
  %s15 = scalar_select 0, %s14, %s12
  %s16 = sshll.u32 %s0, 4
  %s17 = int_to_ptr.vmem [resolvable:$true] %s16
  %19 = dma.vmem_to_smem %s17, 16, [#allocation3], [#allocation2]
  %20 = dma.done [#allocation2], 16
  %21 = sfence
  $region1: #{tpu_custom_call.1} parent=0
    #allocation4 [shape = 'u8[8192]{0}', space=vmem, size = 0x2000, scoped, tag = 'output window, operand 0']
    #allocation5 [shape = 's32[2]{0}', space=sflag, size = 0x8, scoped, tag = 'scoped memory for tpu_custom_call.1']
    %22 = vsyncpa [#allocation5], 0
    %s23 = scalar_lea.sflag [#allocation5], 1
    %24 = vsyncpa %s23, 0
    loop: start=0, step=1, limit=10
    $region2: #{tpu_custom_call.1} parent=1 // loop_pre_header
      _
    $region3: #{tpu_custom_call.1} parent=1 // loop_header
      %s26 = sphi 0, %s30
      %p27 = scmp.ge.s32.totalorder %s26, 10
      %s33 = sphi 0, %s45
      %s34 = sphi 0, %s41
      %s35 = sphi 0, %s33
      %s36 = sphi 0, %s34
      %s37 = sphi 0, %s35
      %s38 = sphi 0, %s36
      %s48 = sphi 0, %s50
      %s51 = sphi 0, %s48
      %s52 = sphi 0, %s51
      %s68 = sphi 0, %s52
      %s74 = sphi 0, %s76
      %s77 = sphi 0, %s74
      %s78 = sphi 0, %s77
      %s94 = sphi 0, %s78
      %s100 = sphi 0, %s102
      %s103 = sphi 0, %s100
      %s104 = sphi 0, %s103
      %s120 = sphi 0, %s104
      %s126 = sphi 0, %s128
      %s129 = sphi 0, %s126
      %s130 = sphi 0, %s129
      %s146 = sphi 0, %s130
      %s152 = sphi 0, %s154
      %s155 = sphi 0, %s152
      %s156 = sphi 0, %s155
      %s172 = sphi 0, %s156
      %s178 = sphi 0, %s180
      %s181 = sphi 0, %s178
      %s182 = sphi 0, %s181
      %s198 = sphi 0, %s182
      %s204 = sphi 0, %s206
      %s207 = sphi 0, %s204
      %s208 = sphi 0, %s207
      %s224 = sphi 0, %s208
      %s230 = sphi 0, %s232
      %s233 = sphi 0, %s230
      %s234 = sphi 0, %s233
      %s250 = sphi 0, %s234
      %s254 = sphi 0, %s254
      %s256 = sphi 0, %s254
      %s257 = sphi 0, %s256
      %s271 = sphi 0, %s257
      %s275 = sphi 0, %s275
      %s277 = sphi 0, %s275
      %s278 = sphi 0, %s277
      %s292 = sphi 0, %s278
      %s298 = sphi 0, %s300
      %s301 = sphi 0, %s298
      %s302 = sphi 0, %s301
      %s318 = sphi 0, %s302
    $region4: #{tpu_custom_call.1} parent=1 // loop_header_branch
      %29 = sbr.rel (%p27) target = $region8
    $region5: #{tpu_custom_call.1} parent=1 // loop_body
      %s31 = ssub.s32 %s26, 1
      %s32 = ssub.s32 %s26, 2
      %s39 = sadd.s32 1, %s34
      %p40 = scmp.ge.s32.totalorder %s39, 4
      %s41 = scalar_select %p40, 0, %s39
      %s42 = sadd.s32 1, %s33
      %s43 = scalar_select %p40, %s42, %s33
      %p44 = scmp.ge.s32.totalorder %s43, 2
      %s45 = scalar_select %p44, 0, %s43
      %s46 = ssub.s32 %s33, %s45
      %p47 = scmp.eq.s32.totalorder %s46, 0
      %s49 = sadd.s32 %s48, 1
      %s50 = scalar_select %p47, %s48, %s49
      %p53 = pneg %p47
      %p54 = scmp.eq.s32.totalorder %s26, 7
      %p55 = por %p53, %p54
      %p56 = scmp.ne.s32.totalorder %s48, %s51
      %p57 = scmp.eq.s32.totalorder %s26, 0
      %p58 = por %p56, %p57
      %p59 = scmp.ne.s32.totalorder %s48, %s51
      %p60 = scmp.eq.s32.totalorder %s31, 7
      %p61 = por %p59, %p60
      %p62 = scmp.ne.s32.totalorder %s51, %s52
      %p63 = scmp.eq.s32.totalorder %s31, 0
      %p64 = por %p62, %p63
      %p65 = scmp.ne.s32.totalorder %s51, %s52
      %p66 = scmp.eq.s32.totalorder %s32, 7
      %p67 = por %p65, %p66
      %p69 = scmp.ne.s32.totalorder %s52, %s68
      %p70 = scmp.eq.s32.totalorder %s32, 0
      %p71 = por %p69, %p70
      %s72 = ssub.s32 %s34, %s41
      %p73 = scmp.eq.s32.totalorder %s72, 0
      %s75 = sadd.s32 %s74, 1
      %s76 = scalar_select %p73, %s74, %s75
      %p79 = pneg %p73
      %p80 = scmp.eq.s32.totalorder %s26, 7
      %p81 = por %p79, %p80
      %p82 = scmp.ne.s32.totalorder %s74, %s77
      %p83 = scmp.eq.s32.totalorder %s26, 0
      %p84 = por %p82, %p83
      %p85 = scmp.ne.s32.totalorder %s74, %s77
      %p86 = scmp.eq.s32.totalorder %s31, 7
      %p87 = por %p85, %p86
      %p88 = scmp.ne.s32.totalorder %s77, %s78
      %p89 = scmp.eq.s32.totalorder %s31, 0
      %p90 = por %p88, %p89
      %p91 = scmp.ne.s32.totalorder %s77, %s78
      %p92 = scmp.eq.s32.totalorder %s32, 7
      %p93 = por %p91, %p92
      %p95 = scmp.ne.s32.totalorder %s78, %s94
      %p96 = scmp.eq.s32.totalorder %s32, 0
      %p97 = por %p95, %p96
      %s98 = ssub.s32 %s34, %s41
      %p99 = scmp.eq.s32.totalorder %s98, 0
      %s101 = sadd.s32 %s100, 1
      %s102 = scalar_select %p99, %s100, %s101
      %p105 = pneg %p99
      %p106 = scmp.eq.s32.totalorder %s26, 7
      %p107 = por %p105, %p106
      %p108 = scmp.ne.s32.totalorder %s100, %s103
      %p109 = scmp.eq.s32.totalorder %s26, 0
      %p110 = por %p108, %p109
      %p111 = scmp.ne.s32.totalorder %s100, %s103
      %p112 = scmp.eq.s32.totalorder %s31, 7
      %p113 = por %p111, %p112
      %p114 = scmp.ne.s32.totalorder %s103, %s104
      %p115 = scmp.eq.s32.totalorder %s31, 0
      %p116 = por %p114, %p115
      %p117 = scmp.ne.s32.totalorder %s103, %s104
      %p118 = scmp.eq.s32.totalorder %s32, 7
      %p119 = por %p117, %p118
      %p121 = scmp.ne.s32.totalorder %s104, %s120
      %p122 = scmp.eq.s32.totalorder %s32, 0
      %p123 = por %p121, %p122
      %s124 = ssub.s32 %s34, %s41
      %p125 = scmp.eq.s32.totalorder %s124, 0
      %s127 = sadd.s32 %s126, 1
      %s128 = scalar_select %p125, %s126, %s127
      %p131 = pneg %p125
      %p132 = scmp.eq.s32.totalorder %s26, 7
      %p133 = por %p131, %p132
      %p134 = scmp.ne.s32.totalorder %s126, %s129
      %p135 = scmp.eq.s32.totalorder %s26, 0
      %p136 = por %p134, %p135
      %p137 = scmp.ne.s32.totalorder %s126, %s129
      %p138 = scmp.eq.s32.totalorder %s31, 7
      %p139 = por %p137, %p138
      %p140 = scmp.ne.s32.totalorder %s129, %s130
      %p141 = scmp.eq.s32.totalorder %s31, 0
      %p142 = por %p140, %p141
      %p143 = scmp.ne.s32.totalorder %s129, %s130
      %p144 = scmp.eq.s32.totalorder %s32, 7
      %p145 = por %p143, %p144
      %p147 = scmp.ne.s32.totalorder %s130, %s146
      %p148 = scmp.eq.s32.totalorder %s32, 0
      %p149 = por %p147, %p148
      %s150 = ssub.s32 %s34, %s41
      %p151 = scmp.eq.s32.totalorder %s150, 0
      %s153 = sadd.s32 %s152, 1
      %s154 = scalar_select %p151, %s152, %s153
      %p157 = pneg %p151
      %p158 = scmp.eq.s32.totalorder %s26, 7
      %p159 = por %p157, %p158
      %p160 = scmp.ne.s32.totalorder %s152, %s155
      %p161 = scmp.eq.s32.totalorder %s26, 0
      %p162 = por %p160, %p161
      %p163 = scmp.ne.s32.totalorder %s152, %s155
      %p164 = scmp.eq.s32.totalorder %s31, 7
      %p165 = por %p163, %p164
      %p166 = scmp.ne.s32.totalorder %s155, %s156
      %p167 = scmp.eq.s32.totalorder %s31, 0
      %p168 = por %p166, %p167
      %p169 = scmp.ne.s32.totalorder %s155, %s156
      %p170 = scmp.eq.s32.totalorder %s32, 7
      %p171 = por %p169, %p170
      %p173 = scmp.ne.s32.totalorder %s156, %s172
      %p174 = scmp.eq.s32.totalorder %s32, 0
      %p175 = por %p173, %p174
      %s176 = ssub.s32 %s34, %s41
      %p177 = scmp.eq.s32.totalorder %s176, 0
      %s179 = sadd.s32 %s178, 1
      %s180 = scalar_select %p177, %s178, %s179
      %p183 = pneg %p177
      %p184 = scmp.eq.s32.totalorder %s26, 7
      %p185 = por %p183, %p184
      %p186 = scmp.ne.s32.totalorder %s178, %s181
      %p187 = scmp.eq.s32.totalorder %s26, 0
      %p188 = por %p186, %p187
      %p189 = scmp.ne.s32.totalorder %s178, %s181
      %p190 = scmp.eq.s32.totalorder %s31, 7
      %p191 = por %p189, %p190
      %p192 = scmp.ne.s32.totalorder %s181, %s182
      %p193 = scmp.eq.s32.totalorder %s31, 0
      %p194 = por %p192, %p193
      %p195 = scmp.ne.s32.totalorder %s181, %s182
      %p196 = scmp.eq.s32.totalorder %s32, 7
      %p197 = por %p195, %p196
      %p199 = scmp.ne.s32.totalorder %s182, %s198
      %p200 = scmp.eq.s32.totalorder %s32, 0
      %p201 = por %p199, %p200
      %s202 = ssub.s32 %s34, %s41
      %p203 = scmp.eq.s32.totalorder %s202, 0
      %s205 = sadd.s32 %s204, 1
      %s206 = scalar_select %p203, %s204, %s205
      %p209 = pneg %p203
      %p210 = scmp.eq.s32.totalorder %s26, 7
      %p211 = por %p209, %p210
      %p212 = scmp.ne.s32.totalorder %s204, %s207
      %p213 = scmp.eq.s32.totalorder %s26, 0
      %p214 = por %p212, %p213
      %p215 = scmp.ne.s32.totalorder %s204, %s207
      %p216 = scmp.eq.s32.totalorder %s31, 7
      %p217 = por %p215, %p216
      %p218 = scmp.ne.s32.totalorder %s207, %s208
      %p219 = scmp.eq.s32.totalorder %s31, 0
      %p220 = por %p218, %p219
      %p221 = scmp.ne.s32.totalorder %s207, %s208
      %p222 = scmp.eq.s32.totalorder %s32, 7
      %p223 = por %p221, %p222
      %p225 = scmp.ne.s32.totalorder %s208, %s224
      %p226 = scmp.eq.s32.totalorder %s32, 0
      %p227 = por %p225, %p226
      %s228 = ssub.s32 %s34, %s41
      %p229 = scmp.eq.s32.totalorder %s228, 0
      %s231 = sadd.s32 %s230, 1
      %s232 = scalar_select %p229, %s230, %s231
      %p235 = pneg %p229
      %p236 = scmp.eq.s32.totalorder %s26, 7
      %p237 = por %p235, %p236
      %p238 = scmp.ne.s32.totalorder %s230, %s233
      %p239 = scmp.eq.s32.totalorder %s26, 0
      %p240 = por %p238, %p239
      %p241 = scmp.ne.s32.totalorder %s230, %s233
      %p242 = scmp.eq.s32.totalorder %s31, 7
      %p243 = por %p241, %p242
      %p244 = scmp.ne.s32.totalorder %s233, %s234
      %p245 = scmp.eq.s32.totalorder %s31, 0
      %p246 = por %p244, %p245
      %p247 = scmp.ne.s32.totalorder %s233, %s234
      %p248 = scmp.eq.s32.totalorder %s32, 7
      %p249 = por %p247, %p248
      %p251 = scmp.ne.s32.totalorder %s234, %s250
      %p252 = scmp.eq.s32.totalorder %s32, 0
      %p253 = por %p251, %p252
      %s255 = sadd.s32 %s254, 1
      %p258 = scmp.eq.s32.totalorder %s26, 7
      %p259 = scmp.ne.s32.totalorder %s254, %s256
      %p260 = scmp.eq.s32.totalorder %s26, 0
      %p261 = por %p259, %p260
      %p262 = scmp.ne.s32.totalorder %s254, %s256
      %p263 = scmp.eq.s32.totalorder %s31, 7
      %p264 = por %p262, %p263
      %p265 = scmp.ne.s32.totalorder %s256, %s257
      %p266 = scmp.eq.s32.totalorder %s31, 0
      %p267 = por %p265, %p266
      %p268 = scmp.ne.s32.totalorder %s256, %s257
      %p269 = scmp.eq.s32.totalorder %s32, 7
      %p270 = por %p268, %p269
      %p272 = scmp.ne.s32.totalorder %s257, %s271
      %p273 = scmp.eq.s32.totalorder %s32, 0
      %p274 = por %p272, %p273
      %s276 = sadd.s32 %s275, 1
      %p279 = scmp.eq.s32.totalorder %s26, 7
      %p280 = scmp.ne.s32.totalorder %s275, %s277
      %p281 = scmp.eq.s32.totalorder %s26, 0
      %p282 = por %p280, %p281
      %p283 = scmp.ne.s32.totalorder %s275, %s277
      %p284 = scmp.eq.s32.totalorder %s31, 7
      %p285 = por %p283, %p284
      %p286 = scmp.ne.s32.totalorder %s277, %s278
      %p287 = scmp.eq.s32.totalorder %s31, 0
      %p288 = por %p286, %p287
      %p289 = scmp.ne.s32.totalorder %s277, %s278
      %p290 = scmp.eq.s32.totalorder %s32, 7
      %p291 = por %p289, %p290
      %p293 = scmp.ne.s32.totalorder %s278, %s292
      %p294 = scmp.eq.s32.totalorder %s32, 0
      %p295 = por %p293, %p294
      %s296 = ssub.s32 %s33, %s45
      %p297 = scmp.eq.s32.totalorder %s296, 0
      %s299 = sadd.s32 %s298, 1
      %s300 = scalar_select %p297, %s298, %s299
      %p303 = pneg %p297
      %p304 = scmp.eq.s32.totalorder %s26, 7
      %p305 = por %p303, %p304
      %p306 = scmp.ne.s32.totalorder %s298, %s301
      %p307 = scmp.eq.s32.totalorder %s26, 0
      %p308 = por %p306, %p307
      %p309 = scmp.ne.s32.totalorder %s298, %s301
      %p310 = scmp.eq.s32.totalorder %s31, 7
      %p311 = por %p309, %p310
      %p312 = scmp.ne.s32.totalorder %s301, %s302
      %p313 = scmp.eq.s32.totalorder %s31, 0
      %p314 = por %p312, %p313
      %p315 = scmp.ne.s32.totalorder %s301, %s302
      %p316 = scmp.eq.s32.totalorder %s32, 7
      %p317 = por %p315, %p316
      %p319 = scmp.ne.s32.totalorder %s302, %s318
      %p320 = scmp.eq.s32.totalorder %s32, 0
      %p321 = por %p319, %p320
      %p322 = scmp.le.s32.totalorder 1, %s26
      %p323 = scmp.lt.s32.totalorder %s26, 9
      %p324 = pnand %p322, %p323
      %p325 = pneg %p324
      // Predicated region
      $region9: #{tpu_custom_call.1} parent=5 // pred_check
        _
      $region10: #{tpu_custom_call.1} parent=5 // pred_check_branch
        %327 = sbr.rel (%p324) target = $region12
      $region11: #{tpu_custom_call.1} parent=5 // pred_region
        %s328 = ssub.s32 %s26, 1
        // Predicated region
        $region13: #{tpu_custom_call.1} parent=11 // pred_check
          %p329 = pneg %p267
        $region14: #{tpu_custom_call.1} parent=11 // pred_check_branch
          %331 = sbr.rel (%p329) target = $region16
        $region15: #{tpu_custom_call.1} parent=11 // pred_region
          _
        $region16: #{tpu_custom_call.1} parent=11 // pred_fallthru
          _
        // Predicated region
        $region17: #{tpu_custom_call.1} parent=11 // pred_check
          %p332 = pneg %p288
        $region18: #{tpu_custom_call.1} parent=11 // pred_check_branch
          %334 = sbr.rel (%p332) target = $region20
        $region19: #{tpu_custom_call.1} parent=11 // pred_region
          _
        $region20: #{tpu_custom_call.1} parent=11 // pred_fallthru
          _
      $region12: #{tpu_custom_call.1} parent=5 // pred_fallthru
        _
      %p335 = scmp.lt.s32.totalorder %s26, 8
      // Predicated region
      $region21: #{tpu_custom_call.1} parent=5 // pred_check
        %p336 = pneg %p335
      $region22: #{tpu_custom_call.1} parent=5 // pred_check_branch
        %338 = sbr.rel (%p336) target = $region24
      $region23: #{tpu_custom_call.1} parent=5 // pred_region
        // Predicated region
        $region25: #{tpu_custom_call.1} parent=23 // pred_check
          %p339 = pneg %p58
        $region26: #{tpu_custom_call.1} parent=23 // pred_check_branch
          %341 = sbr.rel (%p339) target = $region28
        $region27: #{tpu_custom_call.1} parent=23 // pred_region
          %p342 = scmp.lt.s32.totalorder %s33, 1
          %s343 = scalar_select %p342, %s33, 1
          %s344 = smul.addr %s343, 8
          %s345 = scalar_lea.vmem %s1, %s344
        $region28: #{tpu_custom_call.1} parent=23 // pred_fallthru
          _
        // Predicated region
        $region29: #{tpu_custom_call.1} parent=23 // pred_check
          %p346 = pneg %p84
        $region30: #{tpu_custom_call.1} parent=23 // pred_check_branch
          %348 = sbr.rel (%p346) target = $region32
        $region31: #{tpu_custom_call.1} parent=23 // pred_region
          %p349 = scmp.lt.s32.totalorder %s34, 3
          %s350 = scalar_select %p349, %s34, 3
          %s351 = smul.addr %s350, 4
          %s352 = smul.addr %s351, 4
          %s353 = scalar_lea.vmem %s2, %s352
        $region32: #{tpu_custom_call.1} parent=23 // pred_fallthru
          _
        // Predicated region
        $region33: #{tpu_custom_call.1} parent=23 // pred_check
          %p354 = pneg %p110
        $region34: #{tpu_custom_call.1} parent=23 // pred_check_branch
          %356 = sbr.rel (%p354) target = $region36
        $region35: #{tpu_custom_call.1} parent=23 // pred_region
          %p357 = scmp.lt.s32.totalorder %s34, 3
          %s358 = scalar_select %p357, %s34, 3
          %s359 = smul.addr %s358, 4
          %s360 = smul.addr %s359, 4
          %s361 = scalar_lea.vmem %s3, %s360
        $region36: #{tpu_custom_call.1} parent=23 // pred_fallthru
          _
        // Predicated region
        $region37: #{tpu_custom_call.1} parent=23 // pred_check
          %p362 = pneg %p136
        $region38: #{tpu_custom_call.1} parent=23 // pred_check_branch
          %364 = sbr.rel (%p362) target = $region40
        $region39: #{tpu_custom_call.1} parent=23 // pred_region
          %p365 = scmp.lt.s32.totalorder %s34, 3
          %s366 = scalar_select %p365, %s34, 3
          %s367 = smul.addr %s366, 4
          %s368 = smul.addr %s367, 4
          %s369 = scalar_lea.vmem %s4, %s368
        $region40: #{tpu_custom_call.1} parent=23 // pred_fallthru
          _
        // Predicated region
        $region41: #{tpu_custom_call.1} parent=23 // pred_check
          %p370 = pneg %p162
        $region42: #{tpu_custom_call.1} parent=23 // pred_check_branch
          %372 = sbr.rel (%p370) target = $region44
        $region43: #{tpu_custom_call.1} parent=23 // pred_region
          %p373 = scmp.lt.s32.totalorder %s34, 3
          %s374 = scalar_select %p373, %s34, 3
          %s375 = smul.addr %s374, 4
          %s376 = smul.addr %s375, 4
          %s377 = scalar_lea.vmem %s5, %s376
        $region44: #{tpu_custom_call.1} parent=23 // pred_fallthru
          _
        // Predicated region
        $region45: #{tpu_custom_call.1} parent=23 // pred_check
          %p378 = pneg %p188
        $region46: #{tpu_custom_call.1} parent=23 // pred_check_branch
          %380 = sbr.rel (%p378) target = $region48
        $region47: #{tpu_custom_call.1} parent=23 // pred_region
          %p381 = scmp.lt.s32.totalorder %s34, 3
          %s382 = scalar_select %p381, %s34, 3
          %s383 = smul.addr %s382, 4
          %s384 = smul.addr %s383, 4
          %s385 = scalar_lea.vmem %s6, %s384
        $region48: #{tpu_custom_call.1} parent=23 // pred_fallthru
          _
        // Predicated region
        $region49: #{tpu_custom_call.1} parent=23 // pred_check
          %p386 = pneg %p214
        $region50: #{tpu_custom_call.1} parent=23 // pred_check_branch
          %388 = sbr.rel (%p386) target = $region52
        $region51: #{tpu_custom_call.1} parent=23 // pred_region
          %p389 = scmp.lt.s32.totalorder %s34, 3
          %s390 = scalar_select %p389, %s34, 3
          %s391 = smul.addr %s390, 4
          %s392 = smul.addr %s391, 4
          %s393 = scalar_lea.vmem %s7, %s392
        $region52: #{tpu_custom_call.1} parent=23 // pred_fallthru
          _
        // Predicated region
        $region53: #{tpu_custom_call.1} parent=23 // pred_check
          %p394 = pneg %p240
        $region54: #{tpu_custom_call.1} parent=23 // pred_check_branch
          %396 = sbr.rel (%p394) target = $region56
        $region55: #{tpu_custom_call.1} parent=23 // pred_region
          %p397 = scmp.lt.s32.totalorder %s34, 3
          %s398 = scalar_select %p397, %s34, 3
          %s399 = smul.addr %s398, 2
          %s400 = smul.addr %s399, 4
          %s401 = scalar_lea.vmem %s8, %s400
        $region56: #{tpu_custom_call.1} parent=23 // pred_fallthru
          _
      $region24: #{tpu_custom_call.1} parent=5 // pred_fallthru
        _
      %p402 = scmp.le.s32.totalorder 1, %s26
      %p403 = scmp.lt.s32.totalorder %s26, 9
      %p404 = pnand %p402, %p403
      %p405 = pneg %p404
      // Predicated region
      $region57: #{tpu_custom_call.1} parent=5 // pred_check
        _
      $region58: #{tpu_custom_call.1} parent=5 // pred_check_branch
        %407 = sbr.rel (%p404) target = $region60
      $region59: #{tpu_custom_call.1} parent=5 // pred_region
        %s408 = ssub.s32 %s26, 1
        %p409 = scmp.lt.s32.totalorder %s35, 1
        %s410 = scalar_select %p409, %s35, 1
        %s411 = smul.addr %s410, 8
        %s412 = scalar_lea.vmem %s1, %s411
        %p413 = pneg %p64
        %p414 = pneg %p61
        %p415 = scmp.lt.s32.totalorder %s36, 3
        %s416 = scalar_select %p415, %s36, 3
        %s417 = smul.addr %s416, 4
        %s418 = smul.addr %s417, 4
        %s419 = scalar_lea.vmem %s2, %s418
        %p420 = pneg %p90
        %p421 = pneg %p87
        %p422 = scmp.lt.s32.totalorder %s36, 3
        %s423 = scalar_select %p422, %s36, 3
        %s424 = smul.addr %s423, 4
        %s425 = smul.addr %s424, 4
        %s426 = scalar_lea.vmem %s3, %s425
        %p427 = pneg %p116
        %p428 = pneg %p113
        %p429 = scmp.lt.s32.totalorder %s36, 3
        %s430 = scalar_select %p429, %s36, 3
        %s431 = smul.addr %s430, 4
        %s432 = smul.addr %s431, 4
        %s433 = scalar_lea.vmem %s4, %s432
        %p434 = pneg %p142
        %p435 = pneg %p139
        %p436 = scmp.lt.s32.totalorder %s36, 3
        %s437 = scalar_select %p436, %s36, 3
        %s438 = smul.addr %s437, 4
        %s439 = smul.addr %s438, 4
        %s440 = scalar_lea.vmem %s5, %s439
        %p441 = pneg %p168
        %p442 = pneg %p165
        %p443 = scmp.lt.s32.totalorder %s36, 3
        %s444 = scalar_select %p443, %s36, 3
        %s445 = smul.addr %s444, 4
        %s446 = smul.addr %s445, 4
        %s447 = scalar_lea.vmem %s6, %s446
        %p448 = pneg %p194
        %p449 = pneg %p191
        %p450 = scmp.lt.s32.totalorder %s36, 3
        %s451 = scalar_select %p450, %s36, 3
        %s452 = smul.addr %s451, 4
        %s453 = smul.addr %s452, 4
        %s454 = scalar_lea.vmem %s7, %s453
        %p455 = pneg %p220
        %p456 = pneg %p217
        %p457 = scmp.lt.s32.totalorder %s36, 3
        %s458 = scalar_select %p457, %s36, 3
        %s459 = smul.addr %s458, 2
        %s460 = smul.addr %s459, 4
        %s461 = scalar_lea.vmem %s8, %s460
        %p462 = pneg %p246
        %p463 = pneg %p243
        %p464 = pneg %p267
        %p465 = pneg %p264
        %p466 = pneg %p288
        %p467 = pneg %p285
        %p468 = pneg %p314
        %p469 = pneg %p311
        %s470 = sand.u32 %s301, 1
        %s471 = scalar_lea.sflag [#allocation5], %s470
        %s472 = sand.u32 %s301, 1
        %s473 = smul.addr %s472, 8
        %s474 = scalar_lea.vmem [#allocation4], %s473
        %p475 = scmp.lt.s32.totalorder %s35, 1
        %s476 = scalar_select %p475, %s35, 1
        %s477 = smul.addr %s476, 8
        %s478 = scalar_lea.vmem %s1, %s477
        %p479 = scmp.lt.s32.totalorder %s36, 3
        %s480 = scalar_select %p479, %s36, 3
        %s481 = smul.addr %s480, 4
        %s482 = smul.addr %s481, 4
        %s483 = scalar_lea.vmem %s2, %s482
        %p484 = scmp.lt.s32.totalorder %s36, 3
        %s485 = scalar_select %p484, %s36, 3
        %s486 = smul.addr %s485, 4
        %s487 = smul.addr %s486, 4
        %s488 = scalar_lea.vmem %s3, %s487
        %p489 = scmp.lt.s32.totalorder %s36, 3
        %s490 = scalar_select %p489, %s36, 3
        %s491 = smul.addr %s490, 4
        %s492 = smul.addr %s491, 4
        %s493 = scalar_lea.vmem %s4, %s492
        %p494 = scmp.lt.s32.totalorder %s36, 3
        %s495 = scalar_select %p494, %s36, 3
        %s496 = smul.addr %s495, 4
        %s497 = smul.addr %s496, 4
        %s498 = scalar_lea.vmem %s5, %s497
        %p499 = scmp.lt.s32.totalorder %s36, 3
        %s500 = scalar_select %p499, %s36, 3
        %s501 = smul.addr %s500, 4
        %s502 = smul.addr %s501, 4
        %s503 = scalar_lea.vmem %s6, %s502
        %p504 = scmp.lt.s32.totalorder %s36, 3
        %s505 = scalar_select %p504, %s36, 3
        %s506 = smul.addr %s505, 4
        %s507 = smul.addr %s506, 4
        %s508 = scalar_lea.vmem %s7, %s507
        %p509 = scmp.lt.s32.totalorder %s36, 3
        %s510 = scalar_select %p509, %s36, 3
        %s511 = smul.addr %s510, 2
        %s512 = smul.addr %s511, 4
        %s513 = scalar_lea.vmem %s8, %s512
        %v515 = vld [vmem:[%s478] sm:$0xff]
        %v516 = vpack.c.bf16 %v515, %v515
        %v517 = vld [vmem:[%s483] sm:$0xf]
        %v518 = vld [vmem:[%s483 + $0x4] sm:$0xf]
        %v519 = vld [vmem:[%s483 + $0x8] sm:$0xf]
        %v520 = vld [vmem:[%s483 + $0xc] sm:$0xf]
        %v525 = vunpack.c.l.b16 %v517
        %v526 = vunpack.c.l.b16 %v518
        %v527 = vunpack.c.l.b16 %v519
        %v528 = vunpack.c.l.b16 %v520
        %v529 = vpack.c.b16 %v526, %v525
        %v530 = vpack.c.b16 %v528, %v527
        %vm533 = vcmask 261120
        %v535 = vsel %vm533, %v516, 0
        %537 = vmatprep.subr.bf16.mxu0 0
        %538 = vmatpush1.bf16.msra.mxu0 %v529
        %539 = vmatprep.subr.bf16.mxu0 0
        %540 = vmatpush1.bf16.msra.mxu0 %v530
        %541 = vmatprep.subr.bf16.mxu0 0
        %542 = vmatpush1.bf16.msra.mxu0 0
        %543 = vmatprep.subr.bf16.mxu0 0
        %544 = vmatpush1.bf16.msra.mxu0 0
        %545 = vmatprep.subr.bf16.mxu0 0
        %546 = vmatpush1.bf16.msra.mxu0 0
        %547 = vmatprep.subr.bf16.mxu0 0
        %548 = vmatpush1.bf16.msra.mxu0 0
        %549 = vmatprep.subr.bf16.mxu0 0
        %550 = vmatpush1.bf16.msra.mxu0 0
        %551 = vmatprep.subr.bf16.mxu0 0
        %552 = vmatpush1.bf16.msra.mxu0 0
        %553 = vmatprep.subr.bf16.mxu0 0
        %554 = vmatpush1.bf16.msra.mxu0 0
        %555 = vmatprep.subr.bf16.mxu0 0
        %556 = vmatpush1.bf16.msra.mxu0 0
        %557 = vmatprep.subr.bf16.mxu0 0
        %558 = vmatpush1.bf16.msra.mxu0 0
        %559 = vmatprep.subr.bf16.mxu0 0
        %560 = vmatpush1.bf16.msra.mxu0 0
        %561 = vmatprep.subr.bf16.mxu0 0
        %562 = vmatpush1.bf16.msra.mxu0 0
        %563 = vmatprep.subr.bf16.mxu0 0
        %564 = vmatpush1.bf16.msra.mxu0 0
        %565 = vmatprep.subr.bf16.mxu0 0
        %566 = vmatpush1.bf16.msra.mxu0 0
        %567 = vmatprep.subr.bf16.mxu0 0
        %568 = vmatpush1.bf16.msra.mxu0 0
        %569 = vmatprep.mubr.bf16.mxu0 0
        %570 = vmatmul.mubr.bf16.gmra.mrb[0].mxu0 %v535
        %v571 = vpop.f32.mrb[0].mxu0
        %v572 = vadd.f32 0.0, %v571
        %v573 = vpop.f32.mrb[0].mxu0
        %v574 = vpop.f32.mrb[0].mxu0
        %v575 = vpop.f32.mrb[0].mxu0
        %576 = vdwg.mxu0
        %v577 = vld [vmem:[%s488] sm:$0xf]
        %v578 = vld [vmem:[%s488 + $0x4] sm:$0xf]
        %v579 = vld [vmem:[%s488 + $0x8] sm:$0xf]
        %v580 = vld [vmem:[%s488 + $0xc] sm:$0xf]
        %v585 = vunpack.c.l.b16 %v577
        %v586 = vunpack.c.l.b16 %v578
        %v587 = vunpack.c.l.b16 %v579
        %v588 = vunpack.c.l.b16 %v580
        %v589 = vpack.c.b16 %v586, %v585
        %v590 = vpack.c.b16 %v588, %v587
        %593 = vmatprep.subr.bf16.mxu0 0
        %594 = vmatpush1.bf16.msra.mxu0 %v589
        %595 = vmatprep.subr.bf16.mxu0 0
        %596 = vmatpush1.bf16.msra.mxu0 %v590
        %597 = vmatprep.subr.bf16.mxu0 0
        %598 = vmatpush1.bf16.msra.mxu0 0
        %599 = vmatprep.subr.bf16.mxu0 0
        %600 = vmatpush1.bf16.msra.mxu0 0
        %601 = vmatprep.subr.bf16.mxu0 0
        %602 = vmatpush1.bf16.msra.mxu0 0
        %603 = vmatprep.subr.bf16.mxu0 0
        %604 = vmatpush1.bf16.msra.mxu0 0
        %605 = vmatprep.subr.bf16.mxu0 0
        %606 = vmatpush1.bf16.msra.mxu0 0
        %607 = vmatprep.subr.bf16.mxu0 0
        %608 = vmatpush1.bf16.msra.mxu0 0
        %609 = vmatprep.subr.bf16.mxu0 0
        %610 = vmatpush1.bf16.msra.mxu0 0
        %611 = vmatprep.subr.bf16.mxu0 0
        %612 = vmatpush1.bf16.msra.mxu0 0
        %613 = vmatprep.subr.bf16.mxu0 0
        %614 = vmatpush1.bf16.msra.mxu0 0
        %615 = vmatprep.subr.bf16.mxu0 0
        %616 = vmatpush1.bf16.msra.mxu0 0
        %617 = vmatprep.subr.bf16.mxu0 0
        %618 = vmatpush1.bf16.msra.mxu0 0
        %619 = vmatprep.subr.bf16.mxu0 0
        %620 = vmatpush1.bf16.msra.mxu0 0
        %621 = vmatprep.subr.bf16.mxu0 0
        %622 = vmatpush1.bf16.msra.mxu0 0
        %623 = vmatprep.subr.bf16.mxu0 0
        %624 = vmatpush1.bf16.msra.mxu0 0
        %625 = vmatprep.mubr.bf16.mxu0 0
        %626 = vmatmul.mubr.bf16.gmra.mrb[0].mxu0 %v535
        %v627 = vpop.f32.mrb[0].mxu0
        %v628 = vadd.f32 0.0, %v627
        %v629 = vpop.f32.mrb[0].mxu0
        %v630 = vpop.f32.mrb[0].mxu0
        %v631 = vpop.f32.mrb[0].mxu0
        %632 = vdwg.mxu0
        %v633 = vld [vmem:[%s493] sm:$0xf]
        %v634 = vld [vmem:[%s493 + $0x4] sm:$0xf]
        %v635 = vld [vmem:[%s493 + $0x8] sm:$0xf]
        %v636 = vld [vmem:[%s493 + $0xc] sm:$0xf]
        %v641 = vunpack.c.l.b16 %v633
        %v642 = vunpack.c.l.b16 %v634
        %v643 = vunpack.c.l.b16 %v635
        %v644 = vunpack.c.l.b16 %v636
        %v645 = vpack.c.b16 %v642, %v641
        %v646 = vpack.c.b16 %v644, %v643
        %649 = vmatprep.subr.bf16.mxu0 0
        %650 = vmatpush1.bf16.msra.mxu0 %v645
        %651 = vmatprep.subr.bf16.mxu0 0
        %652 = vmatpush1.bf16.msra.mxu0 %v646
        %653 = vmatprep.subr.bf16.mxu0 0
        %654 = vmatpush1.bf16.msra.mxu0 0
        %655 = vmatprep.subr.bf16.mxu0 0
        %656 = vmatpush1.bf16.msra.mxu0 0
        %657 = vmatprep.subr.bf16.mxu0 0
        %658 = vmatpush1.bf16.msra.mxu0 0
        %659 = vmatprep.subr.bf16.mxu0 0
        %660 = vmatpush1.bf16.msra.mxu0 0
        %661 = vmatprep.subr.bf16.mxu0 0
        %662 = vmatpush1.bf16.msra.mxu0 0
        %663 = vmatprep.subr.bf16.mxu0 0
        %664 = vmatpush1.bf16.msra.mxu0 0
        %665 = vmatprep.subr.bf16.mxu0 0
        %666 = vmatpush1.bf16.msra.mxu0 0
        %667 = vmatprep.subr.bf16.mxu0 0
        %668 = vmatpush1.bf16.msra.mxu0 0
        %669 = vmatprep.subr.bf16.mxu0 0
        %670 = vmatpush1.bf16.msra.mxu0 0
        %671 = vmatprep.subr.bf16.mxu0 0
        %672 = vmatpush1.bf16.msra.mxu0 0
        %673 = vmatprep.subr.bf16.mxu0 0
        %674 = vmatpush1.bf16.msra.mxu0 0
        %675 = vmatprep.subr.bf16.mxu0 0
        %676 = vmatpush1.bf16.msra.mxu0 0
        %677 = vmatprep.subr.bf16.mxu0 0
        %678 = vmatpush1.bf16.msra.mxu0 0
        %679 = vmatprep.subr.bf16.mxu0 0
        %680 = vmatpush1.bf16.msra.mxu0 0
        %681 = vmatprep.mubr.bf16.mxu0 0
        %682 = vmatmul.mubr.bf16.gmra.mrb[0].mxu0 %v535
        %v683 = vpop.f32.mrb[0].mxu0
        %v684 = vadd.f32 0.0, %v683
        %v685 = vpop.f32.mrb[0].mxu0
        %v686 = vpop.f32.mrb[0].mxu0
        %v687 = vpop.f32.mrb[0].mxu0
        %688 = vdwg.mxu0
        %v689 = vld [vmem:[%s498] sm:$0xf]
        %v690 = vld [vmem:[%s498 + $0x4] sm:$0xf]
        %v691 = vld [vmem:[%s498 + $0x8] sm:$0xf]
        %v692 = vld [vmem:[%s498 + $0xc] sm:$0xf]
        %v697 = vunpack.c.l.b16 %v689
        %v698 = vunpack.c.l.b16 %v690
        %v699 = vunpack.c.l.b16 %v691
        %v700 = vunpack.c.l.b16 %v692
        %v701 = vpack.c.b16 %v698, %v697
        %v702 = vpack.c.b16 %v700, %v699
        %705 = vmatprep.subr.bf16.mxu0 0
        %706 = vmatpush1.bf16.msra.mxu0 %v701
        %707 = vmatprep.subr.bf16.mxu0 0
        %708 = vmatpush1.bf16.msra.mxu0 %v702
        %709 = vmatprep.subr.bf16.mxu0 0
        %710 = vmatpush1.bf16.msra.mxu0 0
        %711 = vmatprep.subr.bf16.mxu0 0
        %712 = vmatpush1.bf16.msra.mxu0 0
        %713 = vmatprep.subr.bf16.mxu0 0
        %714 = vmatpush1.bf16.msra.mxu0 0
        %715 = vmatprep.subr.bf16.mxu0 0
        %716 = vmatpush1.bf16.msra.mxu0 0
        %717 = vmatprep.subr.bf16.mxu0 0
        %718 = vmatpush1.bf16.msra.mxu0 0
        %719 = vmatprep.subr.bf16.mxu0 0
        %720 = vmatpush1.bf16.msra.mxu0 0
        %721 = vmatprep.subr.bf16.mxu0 0
        %722 = vmatpush1.bf16.msra.mxu0 0
        %723 = vmatprep.subr.bf16.mxu0 0
        %724 = vmatpush1.bf16.msra.mxu0 0
        %725 = vmatprep.subr.bf16.mxu0 0
        %726 = vmatpush1.bf16.msra.mxu0 0
        %727 = vmatprep.subr.bf16.mxu0 0
        %728 = vmatpush1.bf16.msra.mxu0 0
        %729 = vmatprep.subr.bf16.mxu0 0
        %730 = vmatpush1.bf16.msra.mxu0 0
        %731 = vmatprep.subr.bf16.mxu0 0
        %732 = vmatpush1.bf16.msra.mxu0 0
        %733 = vmatprep.subr.bf16.mxu0 0
        %734 = vmatpush1.bf16.msra.mxu0 0
        %735 = vmatprep.subr.bf16.mxu0 0
        %736 = vmatpush1.bf16.msra.mxu0 0
        %737 = vmatprep.mubr.bf16.mxu0 0
        %738 = vmatmul.mubr.bf16.gmra.mrb[0].mxu0 %v535
        %v739 = vpop.f32.mrb[0].mxu0
        %v740 = vadd.f32 0.0, %v739
        %v741 = vpop.f32.mrb[0].mxu0
        %v742 = vpop.f32.mrb[0].mxu0
        %v743 = vpop.f32.mrb[0].mxu0
        %744 = vdwg.mxu0
        %v745 = vld [vmem:[%s503] sm:$0xf]
        %v746 = vld [vmem:[%s503 + $0x4] sm:$0xf]
        %v747 = vld [vmem:[%s503 + $0x8] sm:$0xf]
        %v748 = vld [vmem:[%s503 + $0xc] sm:$0xf]
        %v753 = vunpack.c.l.b16 %v745
        %v754 = vunpack.c.l.b16 %v746
        %v755 = vunpack.c.l.b16 %v747
        %v756 = vunpack.c.l.b16 %v748
        %v757 = vpack.c.b16 %v754, %v753
        %v758 = vpack.c.b16 %v756, %v755
        %761 = vmatprep.subr.bf16.mxu0 0
        %762 = vmatpush1.bf16.msra.mxu0 %v757
        %763 = vmatprep.subr.bf16.mxu0 0
        %764 = vmatpush1.bf16.msra.mxu0 %v758
        %765 = vmatprep.subr.bf16.mxu0 0
        %766 = vmatpush1.bf16.msra.mxu0 0
        %767 = vmatprep.subr.bf16.mxu0 0
        %768 = vmatpush1.bf16.msra.mxu0 0
        %769 = vmatprep.subr.bf16.mxu0 0
        %770 = vmatpush1.bf16.msra.mxu0 0
        %771 = vmatprep.subr.bf16.mxu0 0
        %772 = vmatpush1.bf16.msra.mxu0 0
        %773 = vmatprep.subr.bf16.mxu0 0
        %774 = vmatpush1.bf16.msra.mxu0 0
        %775 = vmatprep.subr.bf16.mxu0 0
        %776 = vmatpush1.bf16.msra.mxu0 0
        %777 = vmatprep.subr.bf16.mxu0 0
        %778 = vmatpush1.bf16.msra.mxu0 0
        %779 = vmatprep.subr.bf16.mxu0 0
        %780 = vmatpush1.bf16.msra.mxu0 0
        %781 = vmatprep.subr.bf16.mxu0 0
        %782 = vmatpush1.bf16.msra.mxu0 0
        %783 = vmatprep.subr.bf16.mxu0 0
        %784 = vmatpush1.bf16.msra.mxu0 0
        %785 = vmatprep.subr.bf16.mxu0 0
        %786 = vmatpush1.bf16.msra.mxu0 0
        %787 = vmatprep.subr.bf16.mxu0 0
        %788 = vmatpush1.bf16.msra.mxu0 0
        %789 = vmatprep.subr.bf16.mxu0 0
        %790 = vmatpush1.bf16.msra.mxu0 0
        %791 = vmatprep.subr.bf16.mxu0 0
        %792 = vmatpush1.bf16.msra.mxu0 0
        %793 = vmatprep.mubr.bf16.mxu0 0
        %794 = vmatmul.mubr.bf16.gmra.mrb[0].mxu0 %v535
        %v795 = vpop.f32.mrb[0].mxu0
        %v796 = vadd.f32 0.0, %v795
        %v797 = vpop.f32.mrb[0].mxu0
        %v798 = vpop.f32.mrb[0].mxu0
        %v799 = vpop.f32.mrb[0].mxu0
        %800 = vdwg.mxu0
        %v801 = vld [vmem:[%s508] sm:$0xf]
        %v802 = vld [vmem:[%s508 + $0x4] sm:$0xf]
        %v803 = vld [vmem:[%s508 + $0x8] sm:$0xf]
        %v804 = vld [vmem:[%s508 + $0xc] sm:$0xf]
        %v809 = vunpack.c.l.b16 %v801
        %v810 = vunpack.c.l.b16 %v802
        %v811 = vunpack.c.l.b16 %v803
        %v812 = vunpack.c.l.b16 %v804
        %v813 = vpack.c.b16 %v810, %v809
        %v814 = vpack.c.b16 %v812, %v811
        %817 = vmatprep.subr.bf16.mxu0 0
        %818 = vmatpush1.bf16.msra.mxu0 %v813
        %819 = vmatprep.subr.bf16.mxu0 0
        %820 = vmatpush1.bf16.msra.mxu0 %v814
        %821 = vmatprep.subr.bf16.mxu0 0
        %822 = vmatpush1.bf16.msra.mxu0 0
        %823 = vmatprep.subr.bf16.mxu0 0
        %824 = vmatpush1.bf16.msra.mxu0 0
        %825 = vmatprep.subr.bf16.mxu0 0
        %826 = vmatpush1.bf16.msra.mxu0 0
        %827 = vmatprep.subr.bf16.mxu0 0
        %828 = vmatpush1.bf16.msra.mxu0 0
        %829 = vmatprep.subr.bf16.mxu0 0
        %830 = vmatpush1.bf16.msra.mxu0 0
        %831 = vmatprep.subr.bf16.mxu0 0
        %832 = vmatpush1.bf16.msra.mxu0 0
        %833 = vmatprep.subr.bf16.mxu0 0
        %834 = vmatpush1.bf16.msra.mxu0 0
        %835 = vmatprep.subr.bf16.mxu0 0
        %836 = vmatpush1.bf16.msra.mxu0 0
        %837 = vmatprep.subr.bf16.mxu0 0
        %838 = vmatpush1.bf16.msra.mxu0 0
        %839 = vmatprep.subr.bf16.mxu0 0
        %840 = vmatpush1.bf16.msra.mxu0 0
        %841 = vmatprep.subr.bf16.mxu0 0
        %842 = vmatpush1.bf16.msra.mxu0 0
        %843 = vmatprep.subr.bf16.mxu0 0
        %844 = vmatpush1.bf16.msra.mxu0 0
        %845 = vmatprep.subr.bf16.mxu0 0
        %846 = vmatpush1.bf16.msra.mxu0 0
        %847 = vmatprep.subr.bf16.mxu0 0
        %848 = vmatpush1.bf16.msra.mxu0 0
        %849 = vmatprep.mubr.bf16.mxu0 0
        %850 = vmatmul.mubr.bf16.gmra.mrb[0].mxu0 %v535
        %v851 = vpop.f32.mrb[0].mxu0
        %v852 = vadd.f32 0.0, %v851
        %v853 = vpop.f32.mrb[0].mxu0
        %v854 = vpop.f32.mrb[0].mxu0
        %v855 = vpop.f32.mrb[0].mxu0
        %856 = vdwg.mxu0
        %v857 = vld [vmem:[%s9] sm:$0xff]
        %v858 = vld [vmem:[%s10] sm:$0xff]
        %v859 = vmul.f32 %v572, %v858
        %v860 = vmul.f32 %v628, %v857
        %v861 = vadd.f32 %v859, %v860
        %v862 = vpack.c.bf16 %v861, %v861
        %v863 = vmul.f32 %v684, %v858
        %v864 = vmul.f32 %v740, %v857
        %v865 = vadd.f32 %v863, %v864
        %v866 = vpack.c.bf16 %v865, %v865
        %s867 = sld [smem:[#allocation3 + %s36]]
        %v868 = vlaneseq
        %v869 = vshrl.u32 %v868, 7
        %v870 = vlaneseq
        %v871 = vand.u32 %v870, 127
        %v872 = vsub.s32 %v869, %v871
        %v873 = vcvt.s32.f32 %v872
        %v874 = vmax.f32 %v873, 0.0
        %v875 = vstv %s867
        %v876 = vmul.f32 %v875, %v874
        %v877 = vmul.f32 %v876, 1.442695
        %v878 = vpow.pop %v877
        %vm879 = vcmp.ge.f32.partialorder %v873, 0.0
        %v880 = vsel %vm879, %v878, 0.0
        %vm881 = vcmask 64512
        %v882 = vsel %vm881, %v880, 0.0
        %883 = vadd.xlane.f32.xlu0 %v882
        %v884 = vpop.xlane.xlu0 %883
        %v885 = vrsqrt.pop %v884
        %v886 = vmul.f32 %v880, %v885
        %v888 = vsel %vm881, %v862, 0
        %v891 = vsel %vm881, %v866, 0
        %893 = vmatprep.subr.bf16.mxu0 0
        %894 = vmatpush1.bf16.xpose.msra.mxu0 %v891
        %895 = vmatprep.subr.bf16.mxu0 0
        %896 = vmatpush1.bf16.xpose.msra.mxu0 0
        %897 = vmatprep.subr.bf16.mxu0 0
        %898 = vmatpush1.bf16.xpose.msra.mxu0 0
        %899 = vmatprep.subr.bf16.mxu0 0
        %900 = vmatpush1.bf16.xpose.msra.mxu0 0
        %901 = vmatprep.subr.bf16.mxu0 0
        %902 = vmatpush1.bf16.xpose.msra.mxu0 0
        %903 = vmatprep.subr.bf16.mxu0 0
        %904 = vmatpush1.bf16.xpose.msra.mxu0 0
        %905 = vmatprep.subr.bf16.mxu0 0
        %906 = vmatpush1.bf16.xpose.msra.mxu0 0
        %907 = vmatprep.subr.bf16.mxu0 0
        %908 = vmatpush1.bf16.xpose.msra.mxu0 0
        %909 = vmatprep.subr.bf16.mxu0 0
        %910 = vmatpush1.bf16.xpose.msra.mxu0 0
        %911 = vmatprep.subr.bf16.mxu0 0
        %912 = vmatpush1.bf16.xpose.msra.mxu0 0
        %913 = vmatprep.subr.bf16.mxu0 0
        %914 = vmatpush1.bf16.xpose.msra.mxu0 0
        %915 = vmatprep.subr.bf16.mxu0 0
        %916 = vmatpush1.bf16.xpose.msra.mxu0 0
        %917 = vmatprep.subr.bf16.mxu0 0
        %918 = vmatpush1.bf16.xpose.msra.mxu0 0
        %919 = vmatprep.subr.bf16.mxu0 0
        %920 = vmatpush1.bf16.xpose.msra.mxu0 0
        %921 = vmatprep.subr.bf16.mxu0 0
        %922 = vmatpush1.bf16.xpose.msra.mxu0 0
        %923 = vmatprep.subr.bf16.mxu0 0
        %924 = vmatpush1.bf16.xpose.msra.mxu0 0
        %925 = vmatprep.mubr.bf16.mxu0 0
        %926 = vmatmul.mubr.bf16.gmra.mrb[0].mxu0 %v888
        %v927 = vpop.f32.mrb[0].mxu0
        %v928 = vadd.f32 0.0, %v927
        %v929 = vpop.f32.mrb[0].mxu0
        %v930 = vpop.f32.mrb[0].mxu0
        %v931 = vpop.f32.mrb[0].mxu0
        %932 = vdwg.mxu0
        %v933 = vmul.f32 %v928, %v886
        %v934 = vand.u32 2147483647, %v933
        %v935 = vsel %vm881, %v934, 0.0
        %936 = vadd.xlane.f32.xlu0 %v935
        %v937 = vpop.xlane.xlu0 %936
        %v938 = vmax.f32 %v937, 1.0
        %v939 = vmin.f32 %v938, 50000.0
        %v940 = vrcp.pop %v939
        %v941 = vmul.f32 %v933, %v940
        %v942 = vpack.c.bf16 %v941, %v941
        %v943 = vpack.c.bf16 %v796, %v796
        %v945 = vsel %vm881, %v942, 0
        %vm947 = vcmask 1043456
        %v949 = vsel %vm947, %v943, 0
        %951 = vmatprep.subr.bf16.mxu0 0
        %952 = vmatpush1.bf16.msra.mxu0 %v949
        %953 = vmatprep.subr.bf16.mxu0 0
        %954 = vmatpush1.bf16.msra.mxu0 0
        %955 = vmatprep.subr.bf16.mxu0 0
        %956 = vmatpush1.bf16.msra.mxu0 0
        %957 = vmatprep.subr.bf16.mxu0 0
        %958 = vmatpush1.bf16.msra.mxu0 0
        %959 = vmatprep.subr.bf16.mxu0 0
        %960 = vmatpush1.bf16.msra.mxu0 0
        %961 = vmatprep.subr.bf16.mxu0 0
        %962 = vmatpush1.bf16.msra.mxu0 0
        %963 = vmatprep.subr.bf16.mxu0 0
        %964 = vmatpush1.bf16.msra.mxu0 0
        %965 = vmatprep.subr.bf16.mxu0 0
        %966 = vmatpush1.bf16.msra.mxu0 0
        %967 = vmatprep.subr.bf16.mxu0 0
        %968 = vmatpush1.bf16.msra.mxu0 0
        %969 = vmatprep.subr.bf16.mxu0 0
        %970 = vmatpush1.bf16.msra.mxu0 0
        %971 = vmatprep.subr.bf16.mxu0 0
        %972 = vmatpush1.bf16.msra.mxu0 0
        %973 = vmatprep.subr.bf16.mxu0 0
        %974 = vmatpush1.bf16.msra.mxu0 0
        %975 = vmatprep.subr.bf16.mxu0 0
        %976 = vmatpush1.bf16.msra.mxu0 0
        %977 = vmatprep.subr.bf16.mxu0 0
        %978 = vmatpush1.bf16.msra.mxu0 0
        %979 = vmatprep.subr.bf16.mxu0 0
        %980 = vmatpush1.bf16.msra.mxu0 0
        %981 = vmatprep.subr.bf16.mxu0 0
        %982 = vmatpush1.bf16.msra.mxu0 0
        %983 = vmatprep.mubr.bf16.mxu0 0
        %984 = vmatmul.mubr.bf16.gmra.mrb[0].mxu0 %v945
        %v985 = vpop.f32.mrb[0].mxu0
        %v986 = vadd.f32 0.0, %v985
        %v987 = vpop.f32.mrb[0].mxu0
        %v988 = vpop.f32.mrb[0].mxu0
        %v989 = vpop.f32.mrb[0].mxu0
        %990 = vdwg.mxu0
        %v991 = vmul.f32 %v986, %v986
        %vm992 = vcmask 130048
        %v993 = vsel %vm992, %v991, 0.0
        %994 = vadd.xlane.f32.xlu0 %v993
        %v995 = vpop.xlane.xlu0 %994
        %v996 = vrcp.pop 16.0
        %v997 = vmul.f32 %v995, %v996
        %v998 = vadd.f32 %v997, 1e-06
        %v999 = vrsqrt.pop %v998
        %v1000 = vmul.f32 %v986, %v999
        %v1001 = vxor.u32 %v852, 2147483648
        %v1002 = vmul.f32 %v1001, 1.442695
        %v1003 = vpow.pop %v1002
        %v1004 = vadd.f32 %v1003, 1.0
        %v1005 = vrcp.pop %v1004
        %v1006 = vmul.f32 1.0, %v1005
        %v1007 = vmul.f32 %v852, %v1006
        %v1008 = vmul.f32 %v1007, %v1000
        %v1009 = vpack.c.bf16 %v1008, %v1008
        %v1010 = vld [vmem:[%s513] sm:$0xf]
        %v1011 = vld [vmem:[%s513 + $0x4] sm:$0xf]
        %v1014 = vunpack.c.l.b16 %v1010
        %v1015 = vunpack.c.l.b16 %v1011
        %v1016 = vpack.c.b16 %v1015, %v1014
        %v1019 = vsel %vm992, %v1009, 0
        %1021 = vmatprep.subr.bf16.mxu0 0
        %1022 = vmatpush1.bf16.msra.mxu0 %v1016
        %1023 = vmatprep.subr.bf16.mxu0 0
        %1024 = vmatpush1.bf16.msra.mxu0 0
        %1025 = vmatprep.subr.bf16.mxu0 0
        %1026 = vmatpush1.bf16.msra.mxu0 0
        %1027 = vmatprep.subr.bf16.mxu0 0
        %1028 = vmatpush1.bf16.msra.mxu0 0
        %1029 = vmatprep.subr.bf16.mxu0 0
        %1030 = vmatpush1.bf16.msra.mxu0 0
        %1031 = vmatprep.subr.bf16.mxu0 0
        %1032 = vmatpush1.bf16.msra.mxu0 0
        %1033 = vmatprep.subr.bf16.mxu0 0
        %1034 = vmatpush1.bf16.msra.mxu0 0
        %1035 = vmatprep.subr.bf16.mxu0 0
        %1036 = vmatpush1.bf16.msra.mxu0 0
        %1037 = vmatprep.subr.bf16.mxu0 0
        %1038 = vmatpush1.bf16.msra.mxu0 0
        %1039 = vmatprep.subr.bf16.mxu0 0
        %1040 = vmatpush1.bf16.msra.mxu0 0
        %1041 = vmatprep.subr.bf16.mxu0 0
        %1042 = vmatpush1.bf16.msra.mxu0 0
        %1043 = vmatprep.subr.bf16.mxu0 0
        %1044 = vmatpush1.bf16.msra.mxu0 0
        %1045 = vmatprep.subr.bf16.mxu0 0
        %1046 = vmatpush1.bf16.msra.mxu0 0
        %1047 = vmatprep.subr.bf16.mxu0 0
        %1048 = vmatpush1.bf16.msra.mxu0 0
        %1049 = vmatprep.subr.bf16.mxu0 0
        %1050 = vmatpush1.bf16.msra.mxu0 0
        %1051 = vmatprep.subr.bf16.mxu0 0
        %1052 = vmatpush1.bf16.msra.mxu0 0
        %1053 = vmatprep.mubr.bf16.mxu0 0
        %1054 = vmatmul.mubr.bf16.gmra.mrb[0].mxu0 %v1019
        %v1055 = vpop.f32.mrb[0].mxu0
        %v1056 = vadd.f32 0.0, %v1055
        %v1057 = vpop.f32.mrb[0].mxu0
        %v1058 = vpop.f32.mrb[0].mxu0
        %v1059 = vpop.f32.mrb[0].mxu0
        %1060 = vdwg.mxu0
        %p1061 = scmp.eq.s32.totalorder %s36, 0
        // Predicated region
        $region61: #{tpu_custom_call.1} parent=59 // pred_check
          %p1062 = pneg %p1061
        $region62: #{tpu_custom_call.1} parent=59 // pred_check_branch
          %1064 = sbr.rel (%p1062) target = $region64
        $region63: #{tpu_custom_call.1} parent=59 // pred_region
          %1065 = vst.msk [vmem:[%s474] sm:$0xff] %vm533, 0.0
        $region64: #{tpu_custom_call.1} parent=59 // pred_fallthru
          _
        %v1066 = vld [vmem:[%s474] sm:$0xff]
        %v1067 = vadd.f32 %v1066, %v1056
        %1068 = vst.msk [vmem:[%s474] sm:$0xff] %vm533, %v1067
        %s1069 = sand.u32 %s301, 1
        %s1070 = scalar_lea.sflag [#allocation5], %s1069
        %s1071 = sand.u32 %s301, 1
        %s1072 = smul.addr %s1071, 8
        %s1073 = scalar_lea.vmem [#allocation4], %s1072
        // Predicated region
        $region65: #{tpu_custom_call.1} parent=59 // pred_check
          %p1074 = pneg %p311
        $region66: #{tpu_custom_call.1} parent=59 // pred_check_branch
          %1076 = sbr.rel (%p1074) target = $region68
        $region67: #{tpu_custom_call.1} parent=59 // pred_region
          %s1078 = ssub.s32 128, 128
          %1079 = vsyncadd %s1070, %s1078
          %s1080 = smul.addr %s35, 128
          %s1081 = scalar_lea.hbm %s11, %s1080
          %s1083 = sshll.u32 %s1073, 4
          %s1084 = int_to_ptr.vmem [resolvable:$true] %s1083
          %1086 = dma.vmem_to_hbm [thread:$0]  %s1084, 128, %s1081, %s1070
        $region68: #{tpu_custom_call.1} parent=59 // pred_fallthru
          _
      $region60: #{tpu_custom_call.1} parent=5 // pred_fallthru
        _
      %p1087 = scmp.le.s32.totalorder 2, %s26
      // Predicated region
      $region69: #{tpu_custom_call.1} parent=5 // pred_check
        %p1088 = pneg %p1087
      $region70: #{tpu_custom_call.1} parent=5 // pred_check_branch
        %1090 = sbr.rel (%p1088) target = $region72
      $region71: #{tpu_custom_call.1} parent=5 // pred_region
        %s1091 = ssub.s32 %s26, 2
        // Predicated region
        $region73: #{tpu_custom_call.1} parent=71 // pred_check
          %p1092 = pneg %p317
        $region74: #{tpu_custom_call.1} parent=71 // pred_check_branch
          %1094 = sbr.rel (%p1092) target = $region76
        $region75: #{tpu_custom_call.1} parent=71 // pred_region
          %s1095 = sand.u32 %s302, 1
          %s1096 = scalar_lea.sflag [#allocation5], %s1095
          %s1097 = sand.u32 %s302, 1
          %s1098 = smul.addr %s1097, 8
          %s1099 = scalar_lea.vmem [#allocation4], %s1098
          %1100 = dma.done %s1096, 128
        $region76: #{tpu_custom_call.1} parent=71 // pred_fallthru
          _
      $region72: #{tpu_custom_call.1} parent=5 // pred_fallthru
        _
    $region6: #{tpu_custom_call.1} parent=1 // loop_footer
      %s30 = sadd.s32 1, %s26
    $region7: #{tpu_custom_call.1} parent=1 // loop_footer_branch
      %25 = sbr.rel target = $region3
    $region8: #{tpu_custom_call.1} parent=1 // loop_exit
      _
    %1101 = vsyncpa [#allocation5], 1
    %s1102 = scalar_lea.sflag [#allocation5], 1
    %1103 = vsyncpa %s1102, 1

</llo_original>
